<compile_context>
chip_gen: v7x
topology: tpu7x:2x2x1
jax: 0.10.0
libtpu: 0.0.40
codegen_flags: <defaults>
</compile_context>

<pallas_src>
import functools

import jax
import jax.numpy as jnp
from jax.experimental import pallas as pl
from jax.experimental.pallas import tpu as pltpu


def _multi_attention_kernel(x_exp_ref, w_all_ref, bias_ref, wo_ref, bo_ref,
                            o_ref, *, batch, seq, emb, n_heads, head_dim):
    B, T, C, H, Dh = batch, seq, emb, n_heads, head_dim
    BT = B * T

    # Packed QKV projection: one MXU pass produces, for every (h, b, t) row,
    #   [ q_h(x_bt)*scale | k_h(x_bt) | v_h(x_bt) placed in head-h lane block ]
    qkv = jnp.dot(x_exp_ref[...], w_all_ref[...],
                  preferred_element_type=jnp.float32)       # (H*B*T, 2*Dh + C)
    qkv = qkv.astype(jnp.bfloat16)                          # single bulk cast

    q = qkv[:, 0:Dh]                                        # (H*B*T, Dh)
    k = qkv[:, Dh:2 * Dh]                                   # (H*B*T, Dh)
    v_placed = qkv[:, 2 * Dh:2 * Dh + C]                    # (H*B*T, C) head-block sparse

    # All B*H attention problems in ONE score matmul (contract over Dh; rhs
    # transposed via dimension numbers, no materialized transpose).  The
    # precomputed bias is block-diagonal over (h, b) and causal over t, so
    # cross-problem entries underflow to exactly 0 after the softmax.
    s = jax.lax.dot_general(q, k, (((1,), (1,)), ((), ())),
                            preferred_element_type=jnp.float32)   # (N, N) f32
    s = s + bias_ref[...]

    # Numerically-stable softmax, one full-width VPU/EUP pass.
    s = s - jnp.max(s, axis=-1, keepdims=True)
    p = jnp.exp(s)
    inv_l = pl.reciprocal(jnp.sum(p, axis=-1, keepdims=True), approx=True)

    # TODO(synk): attention dropout omitted (module evaluated in eval mode).
    pv = jnp.dot(p.astype(jnp.bfloat16), v_placed,
                 preferred_element_type=jnp.float32) * inv_l      # (N, C) f32

    # Rows are ordered (h, b, t); head h's output lives in lane block h and is
    # exactly 0 elsewhere, so summing the H row-chunks IS the head concat —
    # no VMEM scratch, no masked narrow stores.
    heads = pv[0:BT, :]
    for h in range(1, H):
        heads = heads + pv[h * BT:(h + 1) * BT, :]               # (B*T, C) f32

    out = jnp.dot(heads.astype(jnp.bfloat16), wo_ref[...],
                  preferred_element_type=jnp.float32) + bo_ref[...]
    # TODO(synk): output dropout omitted (eval mode => identity).
    o_ref[...] = out.astype(o_ref.dtype)


def pack_params(wq, wk, wv, wo, bo, *, emb_dim, head_dim):
    """One-time weight reformat (hoisted out of the per-call path).

    wq/wk/wv: (H, C, Dh) input-major per-head weights; wo: (C, C); bo: (1, C).
    Returns (w_all bf16 (H*C, 2*Dh + C), wo bf16 (C, C), bo f32 (1, C)).
    Column layout of w_all: [0:Dh]=Q (C**-0.5 scale folded), [Dh:2Dh]=K,
    [2Dh:2Dh+C]=V placed into head-h's lane block.
    """
    C, Dh = emb_dim, head_dim
    H = C // Dh
    scale = float(C) ** -0.5          # PyTorch module scales by emb_dim**(-0.5)
    w_all = jnp.zeros((H * C, 2 * Dh + C), jnp.float32)
    for h in range(H):
        r0 = h * C
        w_all = w_all.at[r0:r0 + C, 0:Dh].set(wq[h] * scale)
        w_all = w_all.at[r0:r0 + C, Dh:2 * Dh].set(wk[h])
        w_all = w_all.at[r0:r0 + C, 2 * Dh + h * Dh:2 * Dh + (h + 1) * Dh].set(wv[h])
    return (w_all.astype(jnp.bfloat16),
            wo.astype(jnp.bfloat16),
            bo.astype(jnp.float32))


@functools.partial(jax.jit, static_argnames=("head_dim",))
def multi_attention(x, w_all, wo, bo, *, head_dim):
    """x: (B, T, C) -> (B, T, C). Weights must come from pack_params."""
    B, T, C = x.shape
    Dh = head_dim
    H = C // Dh
    N = H * B * T

    # Block-expand x so a single matmul yields the packed per-(h,b,t) Q/K/V:
    # row (h, b*T+t) carries x[b,t] in lane block [h*C:(h+1)*C], zeros elsewhere.
    x2d = x.reshape(B * T, C)
    eye_h = jnp.eye(H, dtype=x.dtype)
    x_exp = jnp.einsum("hg,nc->hngc", eye_h, x2d).reshape(N, H * C)
    x_exp = x_exp.astype(jnp.bfloat16)

    # Block-diagonal (same (h,b) problem) + causal additive bias; shape-static,
    # so it constant-folds under jit.
    r = jnp.arange(N)
    grp, t = r // T, r % T
    bias = jnp.where((grp[:, None] == grp[None, :]) & (t[:, None] >= t[None, :]),
                     0.0, -1e30).astype(jnp.float32)

    kernel = functools.partial(_multi_attention_kernel, batch=B, seq=T, emb=C,
                               n_heads=H, head_dim=Dh)

    # Single grid step: problem is a few KB, per-step overhead would dominate.
    out2d = pl.pallas_call(
        kernel,
        out_shape=jax.ShapeDtypeStruct((B * T, C), x.dtype),
        grid=(1,),
        in_specs=[
            pl.BlockSpec((N, H * C), lambda i: (0, 0)),        # block-expanded x
            pl.BlockSpec((H * C, 2 * Dh + C), lambda i: (0, 0)),  # stacked QKV weight
            pl.BlockSpec((N, N), lambda i: (0, 0)),            # block-diag+causal bias
            pl.BlockSpec((C, C), lambda i: (0, 0)),            # Wo
            pl.BlockSpec((1, C), lambda i: (0, 0)),            # bo
        ],
        out_specs=pl.BlockSpec((B * T, C), lambda i: (0, 0)),
        compiler_params=pltpu.CompilerParams(dimension_semantics=("arbitrary",)),
    )(x_exp, w_all, bias, wo, bo)
    return out2d.reshape(B, T, C)


def multi_attention_ref(x, wq, wk, wv, wo, bo):
    """Pure-JAX f32 reference mirroring the PyTorch forward (dropout = identity)."""
    B, T, C = x.shape
    H = wq.shape[0]
    scale = float(C) ** -0.5
    mask = jnp.tril(jnp.ones((T, T), jnp.float32))
    outs = []
    for h in range(H):
        q = x @ wq[h]
        k = x @ wk[h]
        v = x @ wv[h]
        s = (q @ jnp.swapaxes(k, -2, -1)) * scale
        s = jnp.where(mask == 0, -jnp.inf, s)
        a = jax.nn.softmax(s, axis=-1)
        outs.append(a @ v)
    heads = jnp.concatenate(outs, axis=-1)
    return heads @ wo + bo


if __name__ == "__main__":
    # module hyperparams (small, consistent with the forward pass)
    emb_dim, head_dim, context, dropout_rate = 32, 8, 8, 0.1
    B, T, C = 2, context, emb_dim
    H = emb_dim // head_dim

    key = jax.random.PRNGKey(0)
    kx, kq, kk, kv, kwo, kbo = jax.random.split(key, 6)

    x = jax.random.normal(kx, (B, T, C), jnp.float32)

    # deterministic parameter init (nn.Linear-style uniform bounds)
    bound = 1.0 / (emb_dim ** 0.5)
    wq = jax.random.uniform(kq, (H, C, head_dim), jnp.float32, -bound, bound)
    wk = jax.random.uniform(kk, (H, C, head_dim), jnp.float32, -bound, bound)
    wv = jax.random.uniform(kv, (H, C, head_dim), jnp.float32, -bound, bound)
    wo = jax.random.uniform(kwo, (C, C), jnp.float32, -bound, bound)
    bo = jax.random.uniform(kbo, (1, C), jnp.float32, -bound, bound)

    # One-time weight reformat (NOT per call), then the Pallas forward.
    w_all, wo_b, bo_f = pack_params(wq, wk, wv, wo, bo,
                                    emb_dim=emb_dim, head_dim=head_dim)
    out = multi_attention(x, w_all, wo_b, bo_f, head_dim=head_dim)
    out = jax.block_until_ready(out)

    ref = multi_attention_ref(x, wq, wk, wv, wo, bo)
    assert out.shape == (B, T, C)
    # bf16 MXU operands + approx reciprocal -> relaxed tolerance vs pure-f32 ref.
    assert jnp.allclose(out, ref, atol=5e-2, rtol=5e-2), "mismatch vs reference"

    print("KERNEL_OK")
</pallas_src>

<mosaic_0001>
module attributes {stable_mosaic.version = 11 : i64} {
  func.func @_multi_attention_kernel(%arg0: i32, %arg1: memref<64x128xbf16, #tpu.memory_space<vmem>>, %arg2: memref<128x48xbf16, #tpu.memory_space<vmem>>, %arg3: memref<64x64xf32, #tpu.memory_space<vmem>>, %arg4: memref<32x32xbf16, #tpu.memory_space<vmem>>, %arg5: memref<1x32xf32, #tpu.memory_space<vmem>>, %arg6: memref<16x32xf32, #tpu.memory_space<vmem>>) attributes {dimension_semantics = [#tpu.dimension_semantics<arbitrary>], iteration_bounds = array<i64: 1>, scalar_prefetch = 0 : i64, scratch_operands = 0 : i64, tpu.core_type = #tpu.core_type<tc>, window_params = [{pipeline_mode = #tpu.pipeline_mode<synchronous>, transform_indices = @transform_0, window_bounds = array<i64: 64, 128>}, {pipeline_mode = #tpu.pipeline_mode<synchronous>, transform_indices = @transform_1, window_bounds = array<i64: 128, 48>}, {pipeline_mode = #tpu.pipeline_mode<synchronous>, transform_indices = @transform_2, window_bounds = array<i64: 64, 64>}, {pipeline_mode = #tpu.pipeline_mode<synchronous>, transform_indices = @transform_3, window_bounds = array<i64: 32, 32>}, {pipeline_mode = #tpu.pipeline_mode<synchronous>, transform_indices = @transform_4, window_bounds = array<i64: 1, 32>}, {pipeline_mode = #tpu.pipeline_mode<synchronous>, transform_indices = @transform_5, window_bounds = array<i64: 16, 32>}]} {
    %c0 = arith.constant 0 : index
    %c0_0 = arith.constant 0 : index
    %0 = vector.load %arg1[%c0, %c0_0] : memref<64x128xbf16, #tpu.memory_space<vmem>>, vector<64x128xbf16>
    %c0_1 = arith.constant 0 : index
    %c0_2 = arith.constant 0 : index
    %1 = vector.load %arg2[%c0_1, %c0_2] : memref<128x48xbf16, #tpu.memory_space<vmem>>, vector<128x48xbf16>
    %cst = arith.constant dense<0.000000e+00> : vector<64x48xf32>
    %2 = tpu.matmul %0, %1, %cst {dimension_numbers = #tpu.dot_dimension_numbers<[1], [0], [0], [1], [0, 0, 1, 1], [], []>} : vector<64x128xbf16>, vector<128x48xbf16>, vector<64x48xf32> -> vector<64x48xf32>
    %3 = arith.truncf %2 : vector<64x48xf32> to vector<64x48xbf16>
    %4 = vector.extract_strided_slice %3 {offsets = [0, 0], sizes = [64, 8], strides = [1, 1]} : vector<64x48xbf16> to vector<64x8xbf16>
    %5 = vector.extract_strided_slice %3 {offsets = [0, 8], sizes = [64, 8], strides = [1, 1]} : vector<64x48xbf16> to vector<64x8xbf16>
    %6 = vector.extract_strided_slice %3 {offsets = [0, 16], sizes = [64, 32], strides = [1, 1]} : vector<64x48xbf16> to vector<64x32xbf16>
    %cst_3 = arith.constant dense<0.000000e+00> : vector<64x64xf32>
    %7 = tpu.matmul %4, %5, %cst_3 {dimension_numbers = #tpu.dot_dimension_numbers<[1], [1], [0], [0], [0, 0, 1, 0], [], []>} : vector<64x8xbf16>, vector<64x8xbf16>, vector<64x64xf32> -> vector<64x64xf32>
    %c0_4 = arith.constant 0 : index
    %c0_5 = arith.constant 0 : index
    %8 = vector.load %arg3[%c0_4, %c0_5] : memref<64x64xf32, #tpu.memory_space<vmem>>, vector<64x64xf32>
    %9 = arith.addf %7, %8 : vector<64x64xf32>
    %cst_6 = arith.constant dense<0xFF800000> : vector<64xf32>
    %10 = vector.multi_reduction <maximumf>, %9, %cst_6 [1] : vector<64x64xf32> to vector<64xf32>
    %11 = vector.shape_cast %10 : vector<64xf32> to vector<64x1xf32>
    %12 = vector.broadcast %11 : vector<64x1xf32> to vector<64x64xf32>
    %13 = arith.subf %9, %12 : vector<64x64xf32>
    %14 = math.exp %13 : vector<64x64xf32>
    %cst_7 = arith.constant dense<0.000000e+00> : vector<64xf32>
    %15 = vector.multi_reduction <add>, %14, %cst_7 [1] : vector<64x64xf32> to vector<64xf32>
    %16 = vector.shape_cast %15 : vector<64xf32> to vector<64x1xf32>
    %17 = tpu.reciprocal %16 {approx = true} : vector<64x1xf32> -> vector<64x1xf32>
    %18 = arith.truncf %14 : vector<64x64xf32> to vector<64x64xbf16>
    %cst_8 = arith.constant dense<0.000000e+00> : vector<64x32xf32>
    %19 = tpu.matmul %18, %6, %cst_8 {dimension_numbers = #tpu.dot_dimension_numbers<[1], [0], [0], [1], [0, 0, 1, 1], [], []>} : vector<64x64xbf16>, vector<64x32xbf16>, vector<64x32xf32> -> vector<64x32xf32>
    %20 = vector.broadcast %17 : vector<64x1xf32> to vector<64x32xf32>
    %21 = arith.mulf %19, %20 : vector<64x32xf32>
    %22 = vector.extract_strided_slice %21 {offsets = [0, 0], sizes = [16, 32], strides = [1, 1]} : vector<64x32xf32> to vector<16x32xf32>
    %23 = vector.extract_strided_slice %21 {offsets = [16, 0], sizes = [16, 32], strides = [1, 1]} : vector<64x32xf32> to vector<16x32xf32>
    %24 = arith.addf %22, %23 : vector<16x32xf32>
    %25 = vector.extract_strided_slice %21 {offsets = [32, 0], sizes = [16, 32], strides = [1, 1]} : vector<64x32xf32> to vector<16x32xf32>
    %26 = arith.addf %24, %25 : vector<16x32xf32>
    %27 = vector.extract_strided_slice %21 {offsets = [48, 0], sizes = [16, 32], strides = [1, 1]} : vector<64x32xf32> to vector<16x32xf32>
    %28 = arith.addf %26, %27 : vector<16x32xf32>
    %29 = arith.truncf %28 : vector<16x32xf32> to vector<16x32xbf16>
    %c0_9 = arith.constant 0 : index
    %c0_10 = arith.constant 0 : index
    %30 = vector.load %arg4[%c0_9, %c0_10] : memref<32x32xbf16, #tpu.memory_space<vmem>>, vector<32x32xbf16>
    %cst_11 = arith.constant dense<0.000000e+00> : vector<16x32xf32>
    %31 = tpu.matmul %29, %30, %cst_11 {dimension_numbers = #tpu.dot_dimension_numbers<[1], [0], [0], [1], [0, 0, 1, 1], [], []>} : vector<16x32xbf16>, vector<32x32xbf16>, vector<16x32xf32> -> vector<16x32xf32>
    %c0_12 = arith.constant 0 : index
    %c0_13 = arith.constant 0 : index
    %32 = vector.load %arg5[%c0_12, %c0_13] : memref<1x32xf32, #tpu.memory_space<vmem>>, vector<1x32xf32>
    %33 = vector.broadcast %32 : vector<1x32xf32> to vector<16x32xf32>
    %34 = arith.addf %31, %33 : vector<16x32xf32>
    %c0_14 = arith.constant 0 : index
    %c0_15 = arith.constant 0 : index
    %35 = vector.load %arg6[%c0_14, %c0_15] : memref<16x32xf32, #tpu.memory_space<vmem>>, vector<16x32xf32>
    tpu.vector_store %arg6[%c0_14, %c0_15], %34 {strides = array<i32>} : memref<16x32xf32, #tpu.memory_space<vmem>>, vector<16x32xf32>,
    return
  }
  func.func @transform_0(%arg0: i32) -> (i32, i32) {
    %c0_i32 = arith.constant 0 : i32
    %c0_i32_0 = arith.constant 0 : i32
    %c0_i32_1 = arith.constant 0 : i32
    return %c0_i32, %c0_i32_0 : i32, i32
  }
  func.func @transform_1(%arg0: i32) -> (i32, i32) {
    %c0_i32 = arith.constant 0 : i32
    %c0_i32_0 = arith.constant 0 : i32
    %c0_i32_1 = arith.constant 0 : i32
    return %c0_i32, %c0_i32_0 : i32, i32
  }
  func.func @transform_2(%arg0: i32) -> (i32, i32) {
    %c0_i32 = arith.constant 0 : i32
    %c0_i32_0 = arith.constant 0 : i32
    %c0_i32_1 = arith.constant 0 : i32
    return %c0_i32, %c0_i32_0 : i32, i32
  }
  func.func @transform_3(%arg0: i32) -> (i32, i32) {
    %c0_i32 = arith.constant 0 : i32
    %c0_i32_0 = arith.constant 0 : i32
    %c0_i32_1 = arith.constant 0 : i32
    return %c0_i32, %c0_i32_0 : i32, i32
  }
  func.func @transform_4(%arg0: i32) -> (i32, i32) {
    %c0_i32 = arith.constant 0 : i32
    %c0_i32_0 = arith.constant 0 : i32
    %c0_i32_1 = arith.constant 0 : i32
    return %c0_i32, %c0_i32_0 : i32, i32
  }
  func.func @transform_5(%arg0: i32) -> (i32, i32) {
    %c0_i32 = arith.constant 0 : i32
    %c0_i32_0 = arith.constant 0 : i32
    %c0_i32_1 = arith.constant 0 : i32
    return %c0_i32, %c0_i32_0 : i32, i32
  }
}

</mosaic_0001>

<llo_original>
// kernel: multi_attention.1
$region0: #{multi_attention.1}
  #allocation0 [shape = 'u32[]', space=smem, size = 0x4, offset = 0x4, fixed_abs, tag = 'smem constant byte address 0x4 - core index']
  #allocation1 [shape = 'u32[144,128]{1,0:T(1,128)}', space=vmem, size = 0x12000, scoped, tag = 'internal scratch']
  %s0 = inlined_call_operand.vmem [shape: bf16[64,128], index: 0, kind: input, shape index: {}]
  %s1 = inlined_call_operand.vmem [shape: bf16[128,48], index: 1, kind: input, shape index: {}]
  %s2 = inlined_call_operand.vmem [shape: f32[64,64], index: 2, kind: input, shape index: {}]
  %s3 = inlined_call_operand.vmem [shape: bf16[32,32], index: 3, kind: input, shape index: {}]
  %s4 = inlined_call_operand.vmem [shape: f32[1,32], index: 4, kind: input, shape index: {}]
  %s5 = inlined_call_operand.hbm [shape: f32[16,32], index: 5, kind: output, shape index: {}]
  %s6 = sld [smem:[#allocation0]]
  $region30: #{multi_attention.1} parent=0
    _
  %s8 = ssub.s32 1, %s6
  %s9 = scalar_select 0, %s8, %s6
  $region1: #{multi_attention.1} parent=0
    #allocation2 [shape = 'u8[8192]{0}', space=vmem, size = 0x2000, scoped, tag = 'output window, operand 0, single buffered']
    #allocation3 [shape = 's32[1]{0}', space=sflag, size = 0x4, scoped, tag = 'scoped memory for multi_attention.1']
    %10 = vsyncpa [#allocation3], 0
    // Predicated region
    $region2: #{multi_attention.1} parent=1 // pred_check
      _
    $region3: #{multi_attention.1} parent=1 // pred_check_branch
      %12 = sbr.rel (0) target = $region5
    $region4: #{multi_attention.1} parent=1 // pred_region
      _
    $region5: #{multi_attention.1} parent=1 // pred_fallthru
      _
    // Predicated region
    $region6: #{multi_attention.1} parent=1 // pred_check
      _
    $region7: #{multi_attention.1} parent=1 // pred_check_branch
      %14 = sbr.rel (0) target = $region9
    $region8: #{multi_attention.1} parent=1 // pred_region
      _
    $region9: #{multi_attention.1} parent=1 // pred_fallthru
      _
    // Predicated region
    $region10: #{multi_attention.1} parent=1 // pred_check
      _
    $region11: #{multi_attention.1} parent=1 // pred_check_branch
      %16 = sbr.rel (0) target = $region13
    $region12: #{multi_attention.1} parent=1 // pred_region
      _
    $region13: #{multi_attention.1} parent=1 // pred_fallthru
      _
    // Predicated region
    $region14: #{multi_attention.1} parent=1 // pred_check
      _
    $region15: #{multi_attention.1} parent=1 // pred_check_branch
      %18 = sbr.rel (0) target = $region17
    $region16: #{multi_attention.1} parent=1 // pred_region
      _
    $region17: #{multi_attention.1} parent=1 // pred_fallthru
      _
    // Predicated region
    $region18: #{multi_attention.1} parent=1 // pred_check
      _
    $region19: #{multi_attention.1} parent=1 // pred_check_branch
      %20 = sbr.rel (0) target = $region21
    $region20: #{multi_attention.1} parent=1 // pred_region
      _
    $region21: #{multi_attention.1} parent=1 // pred_fallthru
      _
    %v22 = vld [vmem:[%s0] sm:$0xf]
    %v23 = vld [vmem:[%s0 + $0x4] sm:$0xf]
    %v24 = vld [vmem:[%s0 + $0x8] sm:$0xf]
    %v25 = vld [vmem:[%s0 + $0xc] sm:$0xf]
    %v26 = vld [vmem:[%s0 + $0x10] sm:$0xf]
    %v27 = vld [vmem:[%s0 + $0x14] sm:$0xf]
    %v28 = vld [vmem:[%s0 + $0x18] sm:$0xf]
    %v29 = vld [vmem:[%s0 + $0x1c] sm:$0xf]
    %v30 = vld [vmem:[%s1] sm:$0xf]
    %v31 = vld [vmem:[%s1 + $0x4] sm:$0xf]
    %v32 = vld [vmem:[%s1 + $0x8] sm:$0xf]
    %v33 = vld [vmem:[%s1 + $0xc] sm:$0xf]
    %v34 = vld [vmem:[%s1 + $0x10] sm:$0xf]
    %v35 = vld [vmem:[%s1 + $0x14] sm:$0xf]
    %v36 = vld [vmem:[%s1 + $0x18] sm:$0xf]
    %v37 = vld [vmem:[%s1 + $0x1c] sm:$0xf]
    %v38 = vld [vmem:[%s1 + $0x20] sm:$0xf]
    %v39 = vld [vmem:[%s1 + $0x24] sm:$0xf]
    %v40 = vld [vmem:[%s1 + $0x28] sm:$0xf]
    %v41 = vld [vmem:[%s1 + $0x2c] sm:$0xf]
    %v42 = vld [vmem:[%s1 + $0x30] sm:$0xf]
    %v43 = vld [vmem:[%s1 + $0x34] sm:$0xf]
    %v44 = vld [vmem:[%s1 + $0x38] sm:$0xf]
    %v45 = vld [vmem:[%s1 + $0x3c] sm:$0xf]
    %v54 = vunpack.c.l.b16 %v22
    %v55 = vunpack.c.l.b16 %v23
    %v56 = vunpack.c.l.b16 %v24
    %v57 = vunpack.c.l.b16 %v25
    %v58 = vunpack.c.l.b16 %v26
    %v59 = vunpack.c.l.b16 %v27
    %v60 = vunpack.c.l.b16 %v28
    %v61 = vunpack.c.l.b16 %v29
    %v62 = vpack.c.b16 %v55, %v54
    %v63 = vpack.c.b16 %v57, %v56
    %v64 = vpack.c.b16 %v59, %v58
    %v65 = vpack.c.b16 %v61, %v60
    %v86 = vunpack.c.l.b16 %v30
    %v87 = vunpack.c.l.b16 %v31
    %v88 = vunpack.c.l.b16 %v32
    %v89 = vunpack.c.l.b16 %v33
    %v90 = vunpack.c.l.b16 %v34
    %v91 = vunpack.c.l.b16 %v35
    %v92 = vunpack.c.l.b16 %v36
    %v93 = vunpack.c.l.b16 %v37
    %v94 = vunpack.c.l.b16 %v38
    %v95 = vunpack.c.l.b16 %v39
    %v96 = vunpack.c.l.b16 %v40
    %v97 = vunpack.c.l.b16 %v41
    %v98 = vunpack.c.l.b16 %v42
    %v99 = vunpack.c.l.b16 %v43
    %v100 = vunpack.c.l.b16 %v44
    %v101 = vunpack.c.l.b16 %v45
    %v102 = vpack.c.b16 %v87, %v86
    %v103 = vpack.c.b16 %v89, %v88
    %v104 = vpack.c.b16 %v91, %v90
    %v105 = vpack.c.b16 %v93, %v92
    %v106 = vpack.c.b16 %v95, %v94
    %v107 = vpack.c.b16 %v97, %v96
    %v108 = vpack.c.b16 %v99, %v98
    %v109 = vpack.c.b16 %v101, %v100
    %118 = vmatprep.subr.bf16.mxu0 0
    %119 = vmatpush1.bf16.msra.mxu0 %v102
    %120 = vmatprep.subr.bf16.mxu0 0
    %121 = vmatpush1.bf16.msra.mxu0 %v103
    %122 = vmatprep.subr.bf16.mxu0 0
    %123 = vmatpush1.bf16.msra.mxu0 %v104
    %124 = vmatprep.subr.bf16.mxu0 0
    %125 = vmatpush1.bf16.msra.mxu0 %v105
    %126 = vmatprep.subr.bf16.mxu0 0
    %127 = vmatpush1.bf16.msra.mxu0 %v106
    %128 = vmatprep.subr.bf16.mxu0 0
    %129 = vmatpush1.bf16.msra.mxu0 %v107
    %130 = vmatprep.subr.bf16.mxu0 0
    %131 = vmatpush1.bf16.msra.mxu0 %v108
    %132 = vmatprep.subr.bf16.mxu0 0
    %133 = vmatpush1.bf16.msra.mxu0 %v109
    %134 = vmatprep.subr.bf16.mxu0 0
    %135 = vmatpush1.bf16.msra.mxu0 0
    %136 = vmatprep.subr.bf16.mxu0 0
    %137 = vmatpush1.bf16.msra.mxu0 0
    %138 = vmatprep.subr.bf16.mxu0 0
    %139 = vmatpush1.bf16.msra.mxu0 0
    %140 = vmatprep.subr.bf16.mxu0 0
    %141 = vmatpush1.bf16.msra.mxu0 0
    %142 = vmatprep.subr.bf16.mxu0 0
    %143 = vmatpush1.bf16.msra.mxu0 0
    %144 = vmatprep.subr.bf16.mxu0 0
    %145 = vmatpush1.bf16.msra.mxu0 0
    %146 = vmatprep.subr.bf16.mxu0 0
    %147 = vmatpush1.bf16.msra.mxu0 0
    %148 = vmatprep.subr.bf16.mxu0 0
    %149 = vmatpush1.bf16.msra.mxu0 0
    %150 = vmatprep.mubr.bf16.mxu0 0
    %151 = vmatmul.mubr.bf16.gmra.mrb[0].mxu0 %v62
    %v152 = vpop.f32.mrb[0].mxu0
    %v153 = vadd.f32 0.0, %v152
    %v154 = vpop.f32.mrb[0].mxu0
    %v155 = vpop.f32.mrb[0].mxu0
    %v156 = vadd.f32 0.0, %v155
    %v157 = vpop.f32.mrb[0].mxu0
    %158 = vmatprep.mubr.bf16.mxu0 0
    %159 = vmatmul.mubr.bf16.gmra.mrb[0].mxu0 %v63
    %v160 = vpop.f32.mrb[0].mxu0
    %v161 = vadd.f32 0.0, %v160
    %v162 = vpop.f32.mrb[0].mxu0
    %v163 = vpop.f32.mrb[0].mxu0
    %v164 = vadd.f32 0.0, %v163
    %v165 = vpop.f32.mrb[0].mxu0
    %166 = vmatprep.mubr.bf16.mxu0 0
    %167 = vmatmul.mubr.bf16.gmra.mrb[0].mxu0 %v64
    %v168 = vpop.f32.mrb[0].mxu0
    %v169 = vadd.f32 0.0, %v168
    %v170 = vpop.f32.mrb[0].mxu0
    %v171 = vpop.f32.mrb[0].mxu0
    %v172 = vadd.f32 0.0, %v171
    %v173 = vpop.f32.mrb[0].mxu0
    %174 = vmatprep.mubr.bf16.mxu0 0
    %175 = vmatmul.mubr.bf16.gmra.mrb[0].mxu0 %v65
    %v176 = vpop.f32.mrb[0].mxu0
    %v177 = vadd.f32 0.0, %v176
    %v178 = vpop.f32.mrb[0].mxu0
    %v179 = vpop.f32.mrb[0].mxu0
    %v180 = vadd.f32 0.0, %v179
    %v181 = vpop.f32.mrb[0].mxu0
    %182 = vdwg.mxu0
    %v183 = vpack.c.bf16 %v156, %v153
    %v184 = vpack.c.bf16 %v164, %v161
    %v185 = vpack.c.bf16 %v172, %v169
    %v186 = vpack.c.bf16 %v180, %v177
    %v187 = vld [vmem:[%s2] sm:$0xff]
    %v188 = vld [vmem:[%s2 + $0x8] sm:$0xff]
    %v189 = vld [vmem:[%s2 + $0x10] sm:$0xff]
    %v190 = vld [vmem:[%s2 + $0x18] sm:$0xff]
    %v191 = vld [vmem:[%s2 + $0x20] sm:$0xff]
    %v192 = vld [vmem:[%s2 + $0x28] sm:$0xff]
    %v193 = vld [vmem:[%s2 + $0x30] sm:$0xff]
    %v194 = vld [vmem:[%s2 + $0x38] sm:$0xff]
    %199 = vrot.lane.b32.xlu0 %v183, 120
    %v200 = vpop.permute.xlu0 %199
    %201 = vrot.lane.b32.xlu0 %v184, 120
    %v202 = vpop.permute.xlu0 %201
    %203 = vrot.lane.b32.xlu0 %v185, 120
    %v204 = vpop.permute.xlu0 %203
    %205 = vrot.lane.b32.xlu0 %v186, 120
    %v206 = vpop.permute.xlu0 %205
    %vm207 = vcmask 64512
    %v209 = vsel %vm207, %v183, 0
    %v212 = vsel %vm207, %v184, 0
    %v215 = vsel %vm207, %v185, 0
    %v218 = vsel %vm207, %v186, 0
    %v221 = vsel %vm207, %v200, 0
    %v224 = vsel %vm207, %v202, 0
    %v227 = vsel %vm207, %v204, 0
    %v230 = vsel %vm207, %v206, 0
    %232 = vmatprep.subr.bf16.mxu0 0
    %233 = vmatpush1.bf16.xpose.msra.mxu0 %v221
    %234 = vmatprep.subr.bf16.mxu0 0
    %235 = vmatpush1.bf16.xpose.msra.mxu0 %v224
    %236 = vmatprep.subr.bf16.mxu0 0
    %237 = vmatpush1.bf16.xpose.msra.mxu0 %v227
    %238 = vmatprep.subr.bf16.mxu0 0
    %239 = vmatpush1.bf16.xpose.msra.mxu0 %v230
    %240 = vmatprep.subr.bf16.mxu0 0
    %241 = vmatpush1.bf16.xpose.msra.mxu0 0
    %242 = vmatprep.subr.bf16.mxu0 0
    %243 = vmatpush1.bf16.xpose.msra.mxu0 0
    %244 = vmatprep.subr.bf16.mxu0 0
    %245 = vmatpush1.bf16.xpose.msra.mxu0 0
    %246 = vmatprep.subr.bf16.mxu0 0
    %247 = vmatpush1.bf16.xpose.msra.mxu0 0
    %248 = vmatprep.subr.bf16.mxu0 0
    %249 = vmatpush1.bf16.xpose.msra.mxu0 0
    %250 = vmatprep.subr.bf16.mxu0 0
    %251 = vmatpush1.bf16.xpose.msra.mxu0 0
    %252 = vmatprep.subr.bf16.mxu0 0
    %253 = vmatpush1.bf16.xpose.msra.mxu0 0
    %254 = vmatprep.subr.bf16.mxu0 0
    %255 = vmatpush1.bf16.xpose.msra.mxu0 0
    %256 = vmatprep.subr.bf16.mxu0 0
    %257 = vmatpush1.bf16.xpose.msra.mxu0 0
    %258 = vmatprep.subr.bf16.mxu0 0
    %259 = vmatpush1.bf16.xpose.msra.mxu0 0
    %260 = vmatprep.subr.bf16.mxu0 0
    %261 = vmatpush1.bf16.xpose.msra.mxu0 0
    %262 = vmatprep.subr.bf16.mxu0 0
    %263 = vmatpush1.bf16.xpose.msra.mxu0 0
    %264 = vmatprep.mubr.bf16.mxu0 0
    %265 = vmatmul.mubr.bf16.gmra.mrb[0].mxu0 %v209
    %v266 = vpop.f32.mrb[0].mxu0
    %v267 = vadd.f32 %v187, %v266
    %v268 = vpop.f32.mrb[0].mxu0
    %v269 = vpop.f32.mrb[0].mxu0
    %v270 = vadd.f32 %v188, %v269
    %v271 = vpop.f32.mrb[0].mxu0
    %272 = vmatprep.mubr.bf16.mxu0 0
    %273 = vmatmul.mubr.bf16.gmra.mrb[0].mxu0 %v212
    %v274 = vpop.f32.mrb[0].mxu0
    %v275 = vadd.f32 %v189, %v274
    %v276 = vpop.f32.mrb[0].mxu0
    %v277 = vpop.f32.mrb[0].mxu0
    %v278 = vadd.f32 %v190, %v277
    %v279 = vpop.f32.mrb[0].mxu0
    %280 = vmatprep.mubr.bf16.mxu0 0
    %281 = vmatmul.mubr.bf16.gmra.mrb[0].mxu0 %v215
    %v282 = vpop.f32.mrb[0].mxu0
    %v283 = vadd.f32 %v191, %v282
    %v284 = vpop.f32.mrb[0].mxu0
    %v285 = vpop.f32.mrb[0].mxu0
    %v286 = vadd.f32 %v192, %v285
    %v287 = vpop.f32.mrb[0].mxu0
    %288 = vmatprep.mubr.bf16.mxu0 0
    %289 = vmatmul.mubr.bf16.gmra.mrb[0].mxu0 %v218
    %v290 = vpop.f32.mrb[0].mxu0
    %v291 = vadd.f32 %v193, %v290
    %v292 = vpop.f32.mrb[0].mxu0
    %v293 = vpop.f32.mrb[0].mxu0
    %v294 = vadd.f32 %v194, %v293
    %v295 = vpop.f32.mrb[0].mxu0
    %296 = vdwg.mxu0
    %vm297 = vcmask 523264
    %v298 = vsel %vm297, %v267, -inf
    %299 = vmax.xlane.f32.xlu0 %v298
    %v300 = vpop.xlane.xlu0 %299
    %v301 = vsel %vm297, %v270, -inf
    %302 = vmax.xlane.f32.xlu0 %v301
    %v303 = vpop.xlane.xlu0 %302
    %v304 = vsel %vm297, %v275, -inf
    %305 = vmax.xlane.f32.xlu0 %v304
    %v306 = vpop.xlane.xlu0 %305
    %v307 = vsel %vm297, %v278, -inf
    %308 = vmax.xlane.f32.xlu0 %v307
    %v309 = vpop.xlane.xlu0 %308
    %v310 = vsel %vm297, %v283, -inf
    %311 = vmax.xlane.f32.xlu0 %v310
    %v312 = vpop.xlane.xlu0 %311
    %v313 = vsel %vm297, %v286, -inf
    %314 = vmax.xlane.f32.xlu0 %v313
    %v315 = vpop.xlane.xlu0 %314
    %v316 = vsel %vm297, %v291, -inf
    %317 = vmax.xlane.f32.xlu0 %v316
    %v318 = vpop.xlane.xlu0 %317
    %v319 = vsel %vm297, %v294, -inf
    %320 = vmax.xlane.f32.xlu0 %v319
    %v321 = vpop.xlane.xlu0 %320
    %v322 = vsub.f32 %v267, %v300
    %v323 = vsub.f32 %v270, %v303
    %v324 = vsub.f32 %v275, %v306
    %v325 = vsub.f32 %v278, %v309
    %v326 = vsub.f32 %v283, %v312
    %v327 = vsub.f32 %v286, %v315
    %v328 = vsub.f32 %v291, %v318
    %v329 = vsub.f32 %v294, %v321
    %v330 = vmul.f32 %v322, 1.442695
    %v331 = vpow.pop %v330
    %v332 = vmul.f32 %v323, 1.442695
    %v333 = vpow.pop %v332
    %v334 = vmul.f32 %v324, 1.442695
    %v335 = vpow.pop %v334
    %v336 = vmul.f32 %v325, 1.442695
    %v337 = vpow.pop %v336
    %v338 = vmul.f32 %v326, 1.442695
    %v339 = vpow.pop %v338
    %v340 = vmul.f32 %v327, 1.442695
    %v341 = vpow.pop %v340
    %v342 = vmul.f32 %v328, 1.442695
    %v343 = vpow.pop %v342
    %v344 = vmul.f32 %v329, 1.442695
    %v345 = vpow.pop %v344
    %v346 = vsel %vm297, %v331, 0.0
    %347 = vadd.xlane.f32.xlu0 %v346
    %v348 = vpop.xlane.xlu0 %347
    %v349 = vsel %vm297, %v333, 0.0
    %350 = vadd.xlane.f32.xlu0 %v349
    %v351 = vpop.xlane.xlu0 %350
    %v352 = vsel %vm297, %v335, 0.0
    %353 = vadd.xlane.f32.xlu0 %v352
    %v354 = vpop.xlane.xlu0 %353
    %v355 = vsel %vm297, %v337, 0.0
    %356 = vadd.xlane.f32.xlu0 %v355
    %v357 = vpop.xlane.xlu0 %356
    %v358 = vsel %vm297, %v339, 0.0
    %359 = vadd.xlane.f32.xlu0 %v358
    %v360 = vpop.xlane.xlu0 %359
    %v361 = vsel %vm297, %v341, 0.0
    %362 = vadd.xlane.f32.xlu0 %v361
    %v363 = vpop.xlane.xlu0 %362
    %v364 = vsel %vm297, %v343, 0.0
    %365 = vadd.xlane.f32.xlu0 %v364
    %v366 = vpop.xlane.xlu0 %365
    %v367 = vsel %vm297, %v345, 0.0
    %368 = vadd.xlane.f32.xlu0 %v367
    %v369 = vpop.xlane.xlu0 %368
    %v370 = vrcp.pop %v348
    %v371 = vrcp.pop %v351
    %v372 = vrcp.pop %v354
    %v373 = vrcp.pop %v357
    %v374 = vrcp.pop %v360
    %v375 = vrcp.pop %v363
    %v376 = vrcp.pop %v366
    %v377 = vrcp.pop %v369
    %v378 = vpack.c.bf16 %v333, %v331
    %v379 = vpack.c.bf16 %v337, %v335
    %v380 = vpack.c.bf16 %v341, %v339
    %v381 = vpack.c.bf16 %v345, %v343
    %382 = vrot.lane.b32.xlu0 %v183, 112
    %v383 = vpop.permute.xlu0 %382
    %384 = vrot.lane.b32.xlu0 %v184, 112
    %v385 = vpop.permute.xlu0 %384
    %386 = vrot.lane.b32.xlu0 %v185, 112
    %v387 = vpop.permute.xlu0 %386
    %388 = vrot.lane.b32.xlu0 %v186, 112
    %v389 = vpop.permute.xlu0 %388
    %v395 = vsel %vm297, %v378, 0
    %v398 = vsel %vm297, %v379, 0
    %v401 = vsel %vm297, %v380, 0
    %v404 = vsel %vm297, %v381, 0
    %406 = vmatprep.subr.bf16.mxu0 0
    %407 = vmatpush1.bf16.msra.mxu0 %v383
    %408 = vmatprep.subr.bf16.mxu0 0
    %409 = vmatpush1.bf16.msra.mxu0 %v385
    %410 = vmatprep.subr.bf16.mxu0 0
    %411 = vmatpush1.bf16.msra.mxu0 %v387
    %412 = vmatprep.subr.bf16.mxu0 0
    %413 = vmatpush1.bf16.msra.mxu0 %v389
    %414 = vmatprep.subr.bf16.mxu0 0
    %415 = vmatpush1.bf16.msra.mxu0 0
    %416 = vmatprep.subr.bf16.mxu0 0
    %417 = vmatpush1.bf16.msra.mxu0 0
    %418 = vmatprep.subr.bf16.mxu0 0
    %419 = vmatpush1.bf16.msra.mxu0 0
    %420 = vmatprep.subr.bf16.mxu0 0
    %421 = vmatpush1.bf16.msra.mxu0 0
    %422 = vmatprep.subr.bf16.mxu0 0
    %423 = vmatpush1.bf16.msra.mxu0 0
    %424 = vmatprep.subr.bf16.mxu0 0
    %425 = vmatpush1.bf16.msra.mxu0 0
    %426 = vmatprep.subr.bf16.mxu0 0
    %427 = vmatpush1.bf16.msra.mxu0 0
    %428 = vmatprep.subr.bf16.mxu0 0
    %429 = vmatpush1.bf16.msra.mxu0 0
    %430 = vmatprep.subr.bf16.mxu0 0
    %431 = vmatpush1.bf16.msra.mxu0 0
    %432 = vmatprep.subr.bf16.mxu0 0
    %433 = vmatpush1.bf16.msra.mxu0 0
    %434 = vmatprep.subr.bf16.mxu0 0
    %435 = vmatpush1.bf16.msra.mxu0 0
    %436 = vmatprep.subr.bf16.mxu0 0
    %437 = vmatpush1.bf16.msra.mxu0 0
    %438 = vmatprep.mubr.bf16.mxu0 0
    %439 = vmatmul.mubr.bf16.gmra.mrb[0].mxu0 %v395
    %v440 = vpop.f32.mrb[0].mxu0
    %v441 = vadd.f32 0.0, %v440
    %v442 = vpop.f32.mrb[0].mxu0
    %v443 = vpop.f32.mrb[0].mxu0
    %v444 = vadd.f32 0.0, %v443
    %v445 = vpop.f32.mrb[0].mxu0
    %446 = vmatprep.mubr.bf16.mxu0 0
    %447 = vmatmul.mubr.bf16.gmra.mrb[0].mxu0 %v398
    %v448 = vpop.f32.mrb[0].mxu0
    %v449 = vadd.f32 0.0, %v448
    %v450 = vpop.f32.mrb[0].mxu0
    %v451 = vpop.f32.mrb[0].mxu0
    %v452 = vadd.f32 0.0, %v451
    %v453 = vpop.f32.mrb[0].mxu0
    %454 = vmatprep.mubr.bf16.mxu0 0
    %455 = vmatmul.mubr.bf16.gmra.mrb[0].mxu0 %v401
    %v456 = vpop.f32.mrb[0].mxu0
    %v457 = vadd.f32 0.0, %v456
    %v458 = vpop.f32.mrb[0].mxu0
    %v459 = vpop.f32.mrb[0].mxu0
    %v460 = vadd.f32 0.0, %v459
    %v461 = vpop.f32.mrb[0].mxu0
    %462 = vmatprep.mubr.bf16.mxu0 0
    %463 = vmatmul.mubr.bf16.gmra.mrb[0].mxu0 %v404
    %v464 = vpop.f32.mrb[0].mxu0
    %v465 = vadd.f32 0.0, %v464
    %v466 = vpop.f32.mrb[0].mxu0
    %v467 = vpop.f32.mrb[0].mxu0
    %v468 = vadd.f32 0.0, %v467
    %v469 = vpop.f32.mrb[0].mxu0
    %470 = vdwg.mxu0
    %v471 = vmul.f32 %v441, %v370
    %v472 = vmul.f32 %v444, %v371
    %v473 = vmul.f32 %v449, %v372
    %v474 = vmul.f32 %v452, %v373
    %v475 = vmul.f32 %v457, %v374
    %v476 = vmul.f32 %v460, %v375
    %v477 = vmul.f32 %v465, %v376
    %v478 = vmul.f32 %v468, %v377
    %v479 = vadd.f32 %v471, %v473
    %v480 = vadd.f32 %v472, %v474
    %v481 = vadd.f32 %v479, %v475
    %v482 = vadd.f32 %v480, %v476
    %v483 = vadd.f32 %v481, %v477
    %v484 = vadd.f32 %v482, %v478
    %v485 = vpack.c.bf16 %v484, %v483
    %v486 = vld [vmem:[%s3] sm:$0xf]
    %v487 = vld [vmem:[%s3 + $0x4] sm:$0xf]
    %v488 = vld [vmem:[%s3 + $0x8] sm:$0xf]
    %v489 = vld [vmem:[%s3 + $0xc] sm:$0xf]
    %v490 = vld [vmem:[%s4] sm:$0x1]
    %v492 = vlaneseq
    %v493 = vshrl.u32 %v492, 7
    %v494 = vsub.s32 0, %v493
    %v495 = vrot.slane %v490, %v494
    %v501 = vunpack.c.l.b16 %v486
    %v502 = vunpack.c.l.b16 %v487
    %v503 = vunpack.c.l.b16 %v488
    %v504 = vunpack.c.l.b16 %v489
    %v505 = vpack.c.b16 %v502, %v501
    %v506 = vpack.c.b16 %v504, %v503
    %vm509 = vcmask 261120
    %v511 = vsel %vm509, %v485, 0
    %513 = vmatprep.subr.bf16.mxu0 0
    %514 = vmatpush1.bf16.msra.mxu0 %v505
    %515 = vmatprep.subr.bf16.mxu0 0
    %516 = vmatpush1.bf16.msra.mxu0 %v506
    %517 = vmatprep.subr.bf16.mxu0 0
    %518 = vmatpush1.bf16.msra.mxu0 0
    %519 = vmatprep.subr.bf16.mxu0 0
    %520 = vmatpush1.bf16.msra.mxu0 0
    %521 = vmatprep.subr.bf16.mxu0 0
    %522 = vmatpush1.bf16.msra.mxu0 0
    %523 = vmatprep.subr.bf16.mxu0 0
    %524 = vmatpush1.bf16.msra.mxu0 0
    %525 = vmatprep.subr.bf16.mxu0 0
    %526 = vmatpush1.bf16.msra.mxu0 0
    %527 = vmatprep.subr.bf16.mxu0 0
    %528 = vmatpush1.bf16.msra.mxu0 0
    %529 = vmatprep.subr.bf16.mxu0 0
    %530 = vmatpush1.bf16.msra.mxu0 0
    %531 = vmatprep.subr.bf16.mxu0 0
    %532 = vmatpush1.bf16.msra.mxu0 0
    %533 = vmatprep.subr.bf16.mxu0 0
    %534 = vmatpush1.bf16.msra.mxu0 0
    %535 = vmatprep.subr.bf16.mxu0 0
    %536 = vmatpush1.bf16.msra.mxu0 0
    %537 = vmatprep.subr.bf16.mxu0 0
    %538 = vmatpush1.bf16.msra.mxu0 0
    %539 = vmatprep.subr.bf16.mxu0 0
    %540 = vmatpush1.bf16.msra.mxu0 0
    %541 = vmatprep.subr.bf16.mxu0 0
    %542 = vmatpush1.bf16.msra.mxu0 0
    %543 = vmatprep.subr.bf16.mxu0 0
    %544 = vmatpush1.bf16.msra.mxu0 0
    %545 = vmatprep.mubr.bf16.mxu0 0
    %546 = vmatmul.mubr.bf16.gmra.mrb[0].mxu0 %v511
    %v547 = vpop.f32.mrb[0].mxu0
    %v548 = vadd.f32 %v495, %v547
    %v549 = vpop.f32.mrb[0].mxu0
    %v550 = vpop.f32.mrb[0].mxu0
    %v551 = vadd.f32 %v495, %v550
    %v552 = vpop.f32.mrb[0].mxu0
    %553 = vdwg.mxu0
    %554 = vst.msk [vmem:[#allocation2] sm:$0xff] %vm509, %v548
    %555 = vst.msk [vmem:[#allocation2 + $0x8] sm:$0xff] %vm509, %v551
    // Predicated region
    $region22: #{multi_attention.1} parent=1 // pred_check
      _
    $region23: #{multi_attention.1} parent=1 // pred_check_branch
      %557 = sbr.rel (0) target = $region25
    $region24: #{multi_attention.1} parent=1 // pred_region
      %s559 = ssub.s32 256, 256
      %560 = vsyncadd [#allocation3], %s559
      %s561 = sshll.u32 [#allocation2], 4
      %s562 = int_to_ptr.vmem [resolvable:$true] %s561
      %567 = dma.vmem_to_hbm [thread:$0]  %s562, 256, %s5, [#allocation3], 128, 128, 8
    $region25: #{multi_attention.1} parent=1 // pred_fallthru
      _
    // Predicated region
    $region26: #{multi_attention.1} parent=1 // pred_check
      _
    $region27: #{multi_attention.1} parent=1 // pred_check_branch
      %569 = sbr.rel (0) target = $region29
    $region28: #{multi_attention.1} parent=1 // pred_region
      %570 = dma.done [#allocation3], 256
    $region29: #{multi_attention.1} parent=1 // pred_fallthru
      _
    %571 = vsyncpa [#allocation3], 1

</llo_original>
